<compile_context>
chip_gen: v5e
topology: v5e:2x2
jax: 0.10.0
libtpu: 0.0.40
codegen_flags: <defaults>
</compile_context>

<pallas_src>
import jax
import jax.numpy as jnp
from jax.experimental import pallas as pl
from jax.experimental.pallas import tpu as pltpu

FILTER_SIZES = (3, 4, 5)


def cnn1d_kernel(emb_ref, wcat_ref, bcat_ref, fcw_ref, fcb_ref, out_ref):
    """Fused conv taps + max-pool + bias + ReLU + Linear on one batch tile."""
    TB, S, E = emb_ref.shape
    n_branch = len(FILTER_SIZES)
    F = bcat_ref.shape[-1] // n_branch
    TF = wcat_ref.shape[-1]                            # sum(filter_sizes) * F

    # One fused, lane-dense matmul covering every tap of every conv branch.
    x2d = emb_ref[...].reshape(TB * S, E)
    y = jnp.dot(x2d, wcat_ref[...], preferred_element_type=jnp.float32)
    y3 = y.reshape(TB, S, TF)                          # (TB, S, 12F), f32

    # Per-branch temporal shift-add on the matmul output, then max over time.
    pooled_parts = []
    off = 0
    for fs in FILTER_SIZES:
        L = S - fs + 1
        conv = y3[:, 0:L, off:off + F]
        for k in range(1, fs):
            conv = conv + y3[:, k:k + L, off + k * F:off + (k + 1) * F]
        pooled_parts.append(jnp.max(conv, axis=1))     # (TB, F)
        off += fs * F
    pooled = jnp.concatenate(pooled_parts, axis=-1)    # (TB, 3F), f32

    # Bias + ReLU after pooling (commute with max), then one fused Linear.
    # TODO(synk): training-mode dropout not implemented (identity at eval).
    pooled = jnp.maximum(pooled + bcat_ref[...], 0.0)
    out = jnp.dot(pooled, fcw_ref[...],
                  preferred_element_type=jnp.float32) + fcb_ref[...]
    out_ref[...] = out.astype(out_ref.dtype)


def cnn1d_classification(emb_x, w_cat, b_cat, fc_w, fc_b, *,
                         batch_tile=8, compute_dtype=jnp.float32):
    """emb_x: (B, S, E) embedded input. Returns (B, num_label) float32."""
    B, S, E = emb_x.shape
    TF = w_cat.shape[-1]
    CF = b_cat.shape[-1]                               # 3 * F
    num_label = fc_w.shape[-1]

    # Batch tile must be a multiple of 8 (sublane) for tiled output blocks.
    TB = max(8, ((batch_tile + 7) // 8) * 8)
    B_pad = ((B + TB - 1) // TB) * TB
    if B_pad != B:
        emb_x = jnp.pad(emb_x, ((0, B_pad - B), (0, 0), (0, 0)))

    # Only the MXU operands are downcast; bias / FC math stays f32.
    emb_x = emb_x.astype(compute_dtype)
    w_cat = w_cat.astype(compute_dtype)
    b_cat = b_cat.astype(jnp.float32)
    fc_w = fc_w.astype(jnp.float32)
    fc_b = fc_b.astype(jnp.float32)

    out = pl.pallas_call(
        cnn1d_kernel,
        out_shape=jax.ShapeDtypeStruct((B_pad, num_label), jnp.float32),
        grid=(B_pad // TB,),
        in_specs=[
            pl.BlockSpec((TB, S, E), lambda i: (i, 0, 0)),
            pl.BlockSpec((E, TF), lambda i: (0, 0)),
            pl.BlockSpec((1, CF), lambda i: (0, 0)),
            pl.BlockSpec((CF, num_label), lambda i: (0, 0)),
            pl.BlockSpec((1, num_label), lambda i: (0, 0)),
        ],
        out_specs=pl.BlockSpec((TB, num_label), lambda i: (i, 0)),
        compiler_params=pltpu.CompilerParams(
            dimension_semantics=("parallel",)),
    )(emb_x, w_cat, b_cat, fc_w, fc_b)
    return out[:B]


def pack_params(conv_ws_torch, conv_bs, fc_w_torch, fc_b):
    """Repack torch-layout params for the fused kernel.

    conv_ws_torch[i]: (F, E, fs_i) Conv1d weight; conv_bs[i]: (F,)
    fc_w_torch: (num_label, 3F); fc_b: (num_label,)
    """
    blocks = []
    for w in conv_ws_torch:
        fs = w.shape[-1]
        for k in range(fs):
            blocks.append(w[:, :, k].T)                       # (E, F)
    w_cat = jnp.concatenate(blocks, axis=1)                   # (E, 12F)
    b_cat = jnp.concatenate([b.reshape(1, -1) for b in conv_bs], axis=1)
    return w_cat, b_cat, fc_w_torch.T, fc_b.reshape(1, -1)


def reference_forward(x_tokens, emb_table, conv_ws_torch, conv_bs,
                      fc_w_torch, fc_b):
    """Pure-JAX reference mirroring the PyTorch forward (eval mode)."""
    emb = emb_table[x_tokens]                          # (S, B, E)
    emb = jnp.transpose(emb, (1, 0, 2))                # (B, S, E)
    pools = []
    for w, b in zip(conv_ws_torch, conv_bs):
        F_, _, fs = w.shape
        L = emb.shape[1] - fs + 1
        conv = jnp.zeros((emb.shape[0], L, F_), jnp.float32)
        for k in range(fs):
            conv = conv + jnp.einsum('ble,fe->blf', emb[:, k:k + L, :],
                                     w[:, :, k])
        conv = jnp.maximum(conv + b.reshape(1, 1, -1), 0.0)
        pools.append(jnp.max(conv, axis=1))
    cat = jnp.concatenate(pools, axis=1)
    return cat @ fc_w_torch.T + fc_b.reshape(1, -1)


if __name__ == "__main__":
    # Small, module-consistent shapes.
    num_embedding = 50   # vocab size
    embedding_dim = 16   # E
    n_filters = 8        # F
    num_label = 3
    S, B = 16, 16        # PyTorch input x is (seq_len, batch) of token ids

    key = jax.random.PRNGKey(0)
    (k_emb, k_w3, k_w4, k_w5, k_b3, k_b4, k_b5,
     k_fc, k_fcb, k_x) = jax.random.split(key, 10)

    emb_table = jax.random.normal(
        k_emb, (num_embedding, embedding_dim), jnp.float32) * 0.1

    conv_ws_torch, conv_bs = [], []
    for fs, kw, kb in zip(FILTER_SIZES, (k_w3, k_w4, k_w5), (k_b3, k_b4, k_b5)):
        conv_ws_torch.append(jax.random.normal(
            kw, (n_filters, embedding_dim, fs), jnp.float32) * 0.1)
        conv_bs.append(jax.random.normal(kb, (n_filters,), jnp.float32) * 0.01)
    fc_w_torch = jax.random.normal(
        k_fc, (num_label, len(FILTER_SIZES) * n_filters), jnp.float32) * 0.1
    fc_b = jax.random.normal(k_fcb, (num_label,), jnp.float32) * 0.01

    # Input token ids, (S, B) as in the PyTorch module.
    x_tokens = jax.random.randint(k_x, (S, B), 0, num_embedding, jnp.int32)

    # Embedding lookup done in plain JAX; layout -> (B, S, E).
    # TODO(synk): fuse the embedding gather into the kernel (scalar-prefetched
    # token ids + DMA row-gather from an HBM table) to remove one HBM round
    # trip of the activation.
    emb_x = jnp.transpose(emb_table[x_tokens], (1, 0, 2)).astype(jnp.float32)

    w_cat, b_cat, fc_w, fc_b2 = pack_params(conv_ws_torch, conv_bs,
                                            fc_w_torch, fc_b)

    ref = reference_forward(x_tokens, emb_table, conv_ws_torch, conv_bs,
                            fc_w_torch, fc_b)

    # f32 path (tight tolerance).
    out_f32 = cnn1d_classification(emb_x, w_cat, b_cat, fc_w, fc_b2,
                                   batch_tile=8, compute_dtype=jnp.float32)
    out_f32 = jax.block_until_ready(out_f32)
    assert out_f32.shape == (B, num_label)
    assert jnp.allclose(out_f32, ref, atol=1e-3, rtol=1e-3)

    # bf16 MXU-operand path (recommended for v6e / v7x), relaxed tolerance.
    out_bf16 = cnn1d_classification(emb_x, w_cat, b_cat, fc_w, fc_b2,
                                    batch_tile=8, compute_dtype=jnp.bfloat16)
    out_bf16 = jax.block_until_ready(out_bf16)
    assert jnp.allclose(out_bf16, ref, atol=5e-2, rtol=5e-2)

    print("KERNEL_OK")
</pallas_src>

<mosaic_0001>
module attributes {stable_mosaic.version = 11 : i64} {
  func.func @cnn1d_kernel(%arg0: i32, %arg1: memref<8x16x16xf32, #tpu.memory_space<vmem>>, %arg2: memref<16x96xf32, #tpu.memory_space<vmem>>, %arg3: memref<1x24xf32, #tpu.memory_space<vmem>>, %arg4: memref<24x3xf32, #tpu.memory_space<vmem>>, %arg5: memref<1x3xf32, #tpu.memory_space<vmem>>, %arg6: memref<8x3xf32, #tpu.memory_space<vmem>>) attributes {dimension_semantics = [#tpu.dimension_semantics<parallel>], iteration_bounds = array<i64: 2>, scalar_prefetch = 0 : i64, scratch_operands = 0 : i64, tpu.core_type = #tpu.core_type<tc>, window_params = [{transform_indices = @transform_0, window_bounds = array<i64: 8, 16, 16>}, {pipeline_mode = #tpu.pipeline_mode<synchronous>, transform_indices = @transform_1, window_bounds = array<i64: 16, 96>}, {pipeline_mode = #tpu.pipeline_mode<synchronous>, transform_indices = @transform_2, window_bounds = array<i64: 1, 24>}, {pipeline_mode = #tpu.pipeline_mode<synchronous>, transform_indices = @transform_3, window_bounds = array<i64: 24, 3>}, {pipeline_mode = #tpu.pipeline_mode<synchronous>, transform_indices = @transform_4, window_bounds = array<i64: 1, 3>}, {transform_indices = @transform_5, window_bounds = array<i64: 8, 3>}]} {
    %c0 = arith.constant 0 : index
    %c0_0 = arith.constant 0 : index
    %c0_1 = arith.constant 0 : index
    %0 = vector.load %arg1[%c0, %c0_0, %c0_1] : memref<8x16x16xf32, #tpu.memory_space<vmem>>, vector<8x16x16xf32>
    %1 = vector.shape_cast %0 : vector<8x16x16xf32> to vector<128x16xf32>
    %c0_2 = arith.constant 0 : index
    %c0_3 = arith.constant 0 : index
    %2 = vector.load %arg2[%c0_2, %c0_3] : memref<16x96xf32, #tpu.memory_space<vmem>>, vector<16x96xf32>
    %cst = arith.constant dense<0.000000e+00> : vector<128x96xf32>
    %3 = tpu.matmul %1, %2, %cst {dimension_numbers = #tpu.dot_dimension_numbers<[1], [0], [0], [1], [0, 0, 1, 1], [], []>} : vector<128x16xf32>, vector<16x96xf32>, vector<128x96xf32> -> vector<128x96xf32>
    %4 = vector.shape_cast %3 : vector<128x96xf32> to vector<8x16x96xf32>
    %5 = vector.extract_strided_slice %4 {offsets = [0, 0, 0], sizes = [8, 14, 8], strides = [1, 1, 1]} : vector<8x16x96xf32> to vector<8x14x8xf32>
    %6 = vector.extract_strided_slice %4 {offsets = [0, 1, 8], sizes = [8, 14, 8], strides = [1, 1, 1]} : vector<8x16x96xf32> to vector<8x14x8xf32>
    %7 = arith.addf %5, %6 : vector<8x14x8xf32>
    %8 = vector.extract_strided_slice %4 {offsets = [0, 2, 16], sizes = [8, 14, 8], strides = [1, 1, 1]} : vector<8x16x96xf32> to vector<8x14x8xf32>
    %9 = arith.addf %7, %8 : vector<8x14x8xf32>
    %cst_4 = arith.constant dense<0xFF800000> : vector<8x8xf32>
    %10 = vector.multi_reduction <maximumf>, %9, %cst_4 [1] : vector<8x14x8xf32> to vector<8x8xf32>
    %11 = vector.extract_strided_slice %4 {offsets = [0, 0, 24], sizes = [8, 13, 8], strides = [1, 1, 1]} : vector<8x16x96xf32> to vector<8x13x8xf32>
    %12 = vector.extract_strided_slice %4 {offsets = [0, 1, 32], sizes = [8, 13, 8], strides = [1, 1, 1]} : vector<8x16x96xf32> to vector<8x13x8xf32>
    %13 = arith.addf %11, %12 : vector<8x13x8xf32>
    %14 = vector.extract_strided_slice %4 {offsets = [0, 2, 40], sizes = [8, 13, 8], strides = [1, 1, 1]} : vector<8x16x96xf32> to vector<8x13x8xf32>
    %15 = arith.addf %13, %14 : vector<8x13x8xf32>
    %16 = vector.extract_strided_slice %4 {offsets = [0, 3, 48], sizes = [8, 13, 8], strides = [1, 1, 1]} : vector<8x16x96xf32> to vector<8x13x8xf32>
    %17 = arith.addf %15, %16 : vector<8x13x8xf32>
    %cst_5 = arith.constant dense<0xFF800000> : vector<8x8xf32>
    %18 = vector.multi_reduction <maximumf>, %17, %cst_5 [1] : vector<8x13x8xf32> to vector<8x8xf32>
    %19 = vector.extract_strided_slice %4 {offsets = [0, 0, 56], sizes = [8, 12, 8], strides = [1, 1, 1]} : vector<8x16x96xf32> to vector<8x12x8xf32>
    %20 = vector.extract_strided_slice %4 {offsets = [0, 1, 64], sizes = [8, 12, 8], strides = [1, 1, 1]} : vector<8x16x96xf32> to vector<8x12x8xf32>
    %21 = arith.addf %19, %20 : vector<8x12x8xf32>
    %22 = vector.extract_strided_slice %4 {offsets = [0, 2, 72], sizes = [8, 12, 8], strides = [1, 1, 1]} : vector<8x16x96xf32> to vector<8x12x8xf32>
    %23 = arith.addf %21, %22 : vector<8x12x8xf32>
    %24 = vector.extract_strided_slice %4 {offsets = [0, 3, 80], sizes = [8, 12, 8], strides = [1, 1, 1]} : vector<8x16x96xf32> to vector<8x12x8xf32>
    %25 = arith.addf %23, %24 : vector<8x12x8xf32>
    %26 = vector.extract_strided_slice %4 {offsets = [0, 4, 88], sizes = [8, 12, 8], strides = [1, 1, 1]} : vector<8x16x96xf32> to vector<8x12x8xf32>
    %27 = arith.addf %25, %26 : vector<8x12x8xf32>
    %cst_6 = arith.constant dense<0xFF800000> : vector<8x8xf32>
    %28 = vector.multi_reduction <maximumf>, %27, %cst_6 [1] : vector<8x12x8xf32> to vector<8x8xf32>
    %29 = tpu.concatenate %10, %18, %28 in 1 : vector<8x8xf32>, vector<8x8xf32>, vector<8x8xf32> -> vector<8x24xf32>
    %c0_7 = arith.constant 0 : index
    %c0_8 = arith.constant 0 : index
    %30 = vector.load %arg3[%c0_7, %c0_8] : memref<1x24xf32, #tpu.memory_space<vmem>>, vector<1x24xf32>
    %31 = vector.broadcast %30 : vector<1x24xf32> to vector<8x24xf32>
    %32 = arith.addf %29, %31 : vector<8x24xf32>
    %cst_9 = arith.constant 0.000000e+00 : f32
    %33 = vector.broadcast %cst_9 : f32 to vector<8x24xf32>
    %34 = arith.maximumf %32, %33 : vector<8x24xf32>
    %c0_10 = arith.constant 0 : index
    %c0_11 = arith.constant 0 : index
    %35 = vector.load %arg4[%c0_10, %c0_11] : memref<24x3xf32, #tpu.memory_space<vmem>>, vector<24x3xf32>
    %cst_12 = arith.constant dense<0.000000e+00> : vector<8x3xf32>
    %36 = tpu.matmul %34, %35, %cst_12 {dimension_numbers = #tpu.dot_dimension_numbers<[1], [0], [0], [1], [0, 0, 1, 1], [], []>} : vector<8x24xf32>, vector<24x3xf32>, vector<8x3xf32> -> vector<8x3xf32>
    %c0_13 = arith.constant 0 : index
    %c0_14 = arith.constant 0 : index
    %37 = vector.load %arg5[%c0_13, %c0_14] : memref<1x3xf32, #tpu.memory_space<vmem>>, vector<1x3xf32>
    %38 = vector.broadcast %37 : vector<1x3xf32> to vector<8x3xf32>
    %39 = arith.addf %36, %38 : vector<8x3xf32>
    %c0_15 = arith.constant 0 : index
    %c0_16 = arith.constant 0 : index
    %40 = vector.load %arg6[%c0_15, %c0_16] : memref<8x3xf32, #tpu.memory_space<vmem>>, vector<8x3xf32>
    tpu.vector_store %arg6[%c0_15, %c0_16], %39 {strides = array<i32>} : memref<8x3xf32, #tpu.memory_space<vmem>>, vector<8x3xf32>,
    return
  }
  func.func @transform_0(%arg0: i32) -> (i32, i32, i32) {
    %c0_i32 = arith.constant 0 : i32
    %c0_i32_0 = arith.constant 0 : i32
    %c0_i32_1 = arith.constant 0 : i32
    return %arg0, %c0_i32, %c0_i32_0 : i32, i32, i32
  }
  func.func @transform_1(%arg0: i32) -> (i32, i32) {
    %c0_i32 = arith.constant 0 : i32
    %c0_i32_0 = arith.constant 0 : i32
    %c0_i32_1 = arith.constant 0 : i32
    return %c0_i32, %c0_i32_0 : i32, i32
  }
  func.func @transform_2(%arg0: i32) -> (i32, i32) {
    %c0_i32 = arith.constant 0 : i32
    %c0_i32_0 = arith.constant 0 : i32
    %c0_i32_1 = arith.constant 0 : i32
    return %c0_i32, %c0_i32_0 : i32, i32
  }
  func.func @transform_3(%arg0: i32) -> (i32, i32) {
    %c0_i32 = arith.constant 0 : i32
    %c0_i32_0 = arith.constant 0 : i32
    %c0_i32_1 = arith.constant 0 : i32
    return %c0_i32, %c0_i32_0 : i32, i32
  }
  func.func @transform_4(%arg0: i32) -> (i32, i32) {
    %c0_i32 = arith.constant 0 : i32
    %c0_i32_0 = arith.constant 0 : i32
    %c0_i32_1 = arith.constant 0 : i32
    return %c0_i32, %c0_i32_0 : i32, i32
  }
  func.func @transform_5(%arg0: i32) -> (i32, i32) {
    %c0_i32 = arith.constant 0 : i32
    %c0_i32_0 = arith.constant 0 : i32
    return %arg0, %c0_i32 : i32, i32
  }
}

</mosaic_0001>

<llo_original>
// kernel: tpu_custom_call.1
$region0: #{tpu_custom_call.1}
  #allocation0 [shape = 'u32[]', space=smem, size = 0x4, offset = 0x4, fixed_abs, tag = 'smem constant byte address 0x4 - core index']
  #allocation1 [shape = 'u32[72,128]{1,0:T(1,128)}', space=vmem, size = 0x9000, scoped, tag = 'internal scratch']
  %s0 = inlined_call_operand.hbm [shape: f32[16,16,16], index: 0, kind: input, shape index: {}]
  %s1 = inlined_call_operand.vmem [shape: f32[16,96], index: 1, kind: input, shape index: {}]
  %s2 = inlined_call_operand.vmem [shape: f32[1,24], index: 2, kind: input, shape index: {}]
  %s3 = inlined_call_operand.vmem [shape: f32[24,3], index: 3, kind: input, shape index: {}]
  %s4 = inlined_call_operand.vmem [shape: f32[1,3], index: 4, kind: input, shape index: {}]
  %s5 = inlined_call_operand.vmem [shape: f32[16,3], index: 5, kind: output, shape index: {}]
  %s6 = sld [smem:[#allocation0]]
  $region57: #{tpu_custom_call.1} parent=0
    _
  %s8 = ssub.s32 1, %s6
  %s9 = scalar_select 0, %s8, %s6
  $region1: #{tpu_custom_call.1} parent=0
    #allocation2 [shape = 'u8[131072]{0}', space=vmem, size = 0x20000, scoped, tag = 'input window, operand 0']
    #allocation3 [shape = 's32[2]{0}', space=sflag, size = 0x8, scoped, tag = 'scoped memory for tpu_custom_call.1']
    %10 = vsyncpa [#allocation3], 0
    %s11 = scalar_lea.sflag [#allocation3], 1
    %12 = vsyncpa %s11, 0
    loop: start=0, step=1, limit=4
    $region2: #{tpu_custom_call.1} parent=1 // loop_pre_header
      _
    $region3: #{tpu_custom_call.1} parent=1 // loop_header
      %s14 = sphi 0, %s18
      %p15 = scmp.ge.s32.totalorder %s14, 4
      %s24 = sphi 0, %s26
      %s27 = sphi 0, %s24
      %s28 = sphi 0, %s27
      %s44 = sphi 0, %s28
      %s48 = sphi 0, %s48
      %s50 = sphi 0, %s48
      %s51 = sphi 0, %s50
      %s65 = sphi 0, %s51
      %s69 = sphi 0, %s69
      %s71 = sphi 0, %s69
      %s72 = sphi 0, %s71
      %s86 = sphi 0, %s72
      %s90 = sphi 0, %s90
      %s92 = sphi 0, %s90
      %s93 = sphi 0, %s92
      %s107 = sphi 0, %s93
      %s111 = sphi 0, %s111
      %s113 = sphi 0, %s111
      %s114 = sphi 0, %s113
      %s128 = sphi 0, %s114
      %s134 = sphi 0, %s136
      %s137 = sphi 0, %s134
      %s138 = sphi 0, %s137
      %s154 = sphi 0, %s138
    $region4: #{tpu_custom_call.1} parent=1 // loop_header_branch
      %17 = sbr.rel (%p15) target = $region8
    $region5: #{tpu_custom_call.1} parent=1 // loop_body
      %s19 = ssub.s32 %s14, 1
      %s20 = ssub.s32 %s14, 2
      %s21 = sadd.s32 %s14, 1
      %s22 = ssub.s32 %s14, %s21
      %p23 = scmp.eq.s32.totalorder %s22, 0
      %s25 = sadd.s32 %s24, 1
      %s26 = scalar_select %p23, %s24, %s25
      %p29 = pneg %p23
      %p30 = scmp.eq.s32.totalorder %s14, 1
      %p31 = por %p29, %p30
      %p32 = scmp.ne.s32.totalorder %s24, %s27
      %p33 = scmp.eq.s32.totalorder %s14, 0
      %p34 = por %p32, %p33
      %p35 = scmp.ne.s32.totalorder %s24, %s27
      %p36 = scmp.eq.s32.totalorder %s19, 1
      %p37 = por %p35, %p36
      %p38 = scmp.ne.s32.totalorder %s27, %s28
      %p39 = scmp.eq.s32.totalorder %s19, 0
      %p40 = por %p38, %p39
      %p41 = scmp.ne.s32.totalorder %s27, %s28
      %p42 = scmp.eq.s32.totalorder %s20, 1
      %p43 = por %p41, %p42
      %p45 = scmp.ne.s32.totalorder %s28, %s44
      %p46 = scmp.eq.s32.totalorder %s20, 0
      %p47 = por %p45, %p46
      %s49 = sadd.s32 %s48, 1
      %p52 = scmp.eq.s32.totalorder %s14, 1
      %p53 = scmp.ne.s32.totalorder %s48, %s50
      %p54 = scmp.eq.s32.totalorder %s14, 0
      %p55 = por %p53, %p54
      %p56 = scmp.ne.s32.totalorder %s48, %s50
      %p57 = scmp.eq.s32.totalorder %s19, 1
      %p58 = por %p56, %p57
      %p59 = scmp.ne.s32.totalorder %s50, %s51
      %p60 = scmp.eq.s32.totalorder %s19, 0
      %p61 = por %p59, %p60
      %p62 = scmp.ne.s32.totalorder %s50, %s51
      %p63 = scmp.eq.s32.totalorder %s20, 1
      %p64 = por %p62, %p63
      %p66 = scmp.ne.s32.totalorder %s51, %s65
      %p67 = scmp.eq.s32.totalorder %s20, 0
      %p68 = por %p66, %p67
      %s70 = sadd.s32 %s69, 1
      %p73 = scmp.eq.s32.totalorder %s14, 1
      %p74 = scmp.ne.s32.totalorder %s69, %s71
      %p75 = scmp.eq.s32.totalorder %s14, 0
      %p76 = por %p74, %p75
      %p77 = scmp.ne.s32.totalorder %s69, %s71
      %p78 = scmp.eq.s32.totalorder %s19, 1
      %p79 = por %p77, %p78
      %p80 = scmp.ne.s32.totalorder %s71, %s72
      %p81 = scmp.eq.s32.totalorder %s19, 0
      %p82 = por %p80, %p81
      %p83 = scmp.ne.s32.totalorder %s71, %s72
      %p84 = scmp.eq.s32.totalorder %s20, 1
      %p85 = por %p83, %p84
      %p87 = scmp.ne.s32.totalorder %s72, %s86
      %p88 = scmp.eq.s32.totalorder %s20, 0
      %p89 = por %p87, %p88
      %s91 = sadd.s32 %s90, 1
      %p94 = scmp.eq.s32.totalorder %s14, 1
      %p95 = scmp.ne.s32.totalorder %s90, %s92
      %p96 = scmp.eq.s32.totalorder %s14, 0
      %p97 = por %p95, %p96
      %p98 = scmp.ne.s32.totalorder %s90, %s92
      %p99 = scmp.eq.s32.totalorder %s19, 1
      %p100 = por %p98, %p99
      %p101 = scmp.ne.s32.totalorder %s92, %s93
      %p102 = scmp.eq.s32.totalorder %s19, 0
      %p103 = por %p101, %p102
      %p104 = scmp.ne.s32.totalorder %s92, %s93
      %p105 = scmp.eq.s32.totalorder %s20, 1
      %p106 = por %p104, %p105
      %p108 = scmp.ne.s32.totalorder %s93, %s107
      %p109 = scmp.eq.s32.totalorder %s20, 0
      %p110 = por %p108, %p109
      %s112 = sadd.s32 %s111, 1
      %p115 = scmp.eq.s32.totalorder %s14, 1
      %p116 = scmp.ne.s32.totalorder %s111, %s113
      %p117 = scmp.eq.s32.totalorder %s14, 0
      %p118 = por %p116, %p117
      %p119 = scmp.ne.s32.totalorder %s111, %s113
      %p120 = scmp.eq.s32.totalorder %s19, 1
      %p121 = por %p119, %p120
      %p122 = scmp.ne.s32.totalorder %s113, %s114
      %p123 = scmp.eq.s32.totalorder %s19, 0
      %p124 = por %p122, %p123
      %p125 = scmp.ne.s32.totalorder %s113, %s114
      %p126 = scmp.eq.s32.totalorder %s20, 1
      %p127 = por %p125, %p126
      %p129 = scmp.ne.s32.totalorder %s114, %s128
      %p130 = scmp.eq.s32.totalorder %s20, 0
      %p131 = por %p129, %p130
      %s132 = ssub.s32 %s14, %s21
      %p133 = scmp.eq.s32.totalorder %s132, 0
      %s135 = sadd.s32 %s134, 1
      %s136 = scalar_select %p133, %s134, %s135
      %p139 = pneg %p133
      %p140 = scmp.eq.s32.totalorder %s14, 1
      %p141 = por %p139, %p140
      %p142 = scmp.ne.s32.totalorder %s134, %s137
      %p143 = scmp.eq.s32.totalorder %s14, 0
      %p144 = por %p142, %p143
      %p145 = scmp.ne.s32.totalorder %s134, %s137
      %p146 = scmp.eq.s32.totalorder %s19, 1
      %p147 = por %p145, %p146
      %p148 = scmp.ne.s32.totalorder %s137, %s138
      %p149 = scmp.eq.s32.totalorder %s19, 0
      %p150 = por %p148, %p149
      %p151 = scmp.ne.s32.totalorder %s137, %s138
      %p152 = scmp.eq.s32.totalorder %s20, 1
      %p153 = por %p151, %p152
      %p155 = scmp.ne.s32.totalorder %s138, %s154
      %p156 = scmp.eq.s32.totalorder %s20, 0
      %p157 = por %p155, %p156
      %p158 = scmp.le.s32.totalorder 1, %s14
      %p159 = scmp.lt.s32.totalorder %s14, 3
      %p160 = pnand %p158, %p159
      %p161 = pneg %p160
      // Predicated region
      $region9: #{tpu_custom_call.1} parent=5 // pred_check
        _
      $region10: #{tpu_custom_call.1} parent=5 // pred_check_branch
        %163 = sbr.rel (%p160) target = $region12
      $region11: #{tpu_custom_call.1} parent=5 // pred_region
        %s164 = ssub.s32 %s14, 1
        // Predicated region
        $region13: #{tpu_custom_call.1} parent=11 // pred_check
          %p165 = pneg %p61
        $region14: #{tpu_custom_call.1} parent=11 // pred_check_branch
          %167 = sbr.rel (%p165) target = $region16
        $region15: #{tpu_custom_call.1} parent=11 // pred_region
          _
        $region16: #{tpu_custom_call.1} parent=11 // pred_fallthru
          _
        // Predicated region
        $region17: #{tpu_custom_call.1} parent=11 // pred_check
          %p168 = pneg %p82
        $region18: #{tpu_custom_call.1} parent=11 // pred_check_branch
          %170 = sbr.rel (%p168) target = $region20
        $region19: #{tpu_custom_call.1} parent=11 // pred_region
          _
        $region20: #{tpu_custom_call.1} parent=11 // pred_fallthru
          _
        // Predicated region
        $region21: #{tpu_custom_call.1} parent=11 // pred_check
          %p171 = pneg %p103
        $region22: #{tpu_custom_call.1} parent=11 // pred_check_branch
          %173 = sbr.rel (%p171) target = $region24
        $region23: #{tpu_custom_call.1} parent=11 // pred_region
          _
        $region24: #{tpu_custom_call.1} parent=11 // pred_fallthru
          _
        // Predicated region
        $region25: #{tpu_custom_call.1} parent=11 // pred_check
          %p174 = pneg %p124
        $region26: #{tpu_custom_call.1} parent=11 // pred_check_branch
          %176 = sbr.rel (%p174) target = $region28
        $region27: #{tpu_custom_call.1} parent=11 // pred_region
          _
        $region28: #{tpu_custom_call.1} parent=11 // pred_fallthru
          _
      $region12: #{tpu_custom_call.1} parent=5 // pred_fallthru
        _
      %p177 = scmp.lt.s32.totalorder %s14, 2
      // Predicated region
      $region29: #{tpu_custom_call.1} parent=5 // pred_check
        %p178 = pneg %p177
      $region30: #{tpu_custom_call.1} parent=5 // pred_check_branch
        %180 = sbr.rel (%p178) target = $region32
      $region31: #{tpu_custom_call.1} parent=5 // pred_region
        // Predicated region
        $region33: #{tpu_custom_call.1} parent=31 // pred_check
          %p181 = pneg %p34
        $region34: #{tpu_custom_call.1} parent=31 // pred_check_branch
          %183 = sbr.rel (%p181) target = $region36
        $region35: #{tpu_custom_call.1} parent=31 // pred_region
          %s184 = sand.u32 %s24, 1
          %s185 = scalar_lea.sflag [#allocation3], %s184
          %s186 = sand.u32 %s24, 1
          %s187 = smul.addr %s186, 128
          %s188 = scalar_lea.vmem [#allocation2], %s187
          %s189 = smul.u32 8, %s14
          %191 = vsyncadd %s185, 0
          %s192 = smul.addr %s189, 2
          %s193 = smul.addr %s192, 8
          %s194 = scalar_lea.hbm %s0, %s193
          %s195 = sshll.u32 %s194, 4
          %s196 = int_to_ptr.hbm [resolvable:$true] %s195
          %s197 = sshll.u32 %s188, 4
          %s198 = int_to_ptr.vmem [resolvable:$true] %s197
          %203 = dma.hbm_to_vmem [thread:$0]  %s196, 2048, %s198, %s185, 128, 128, 8
        $region36: #{tpu_custom_call.1} parent=31 // pred_fallthru
          _
      $region32: #{tpu_custom_call.1} parent=5 // pred_fallthru
        _
      %p204 = scmp.le.s32.totalorder 1, %s14
      %p205 = scmp.lt.s32.totalorder %s14, 3
      %p206 = pnand %p204, %p205
      %p207 = pneg %p206
      // Predicated region
      $region37: #{tpu_custom_call.1} parent=5 // pred_check
        _
      $region38: #{tpu_custom_call.1} parent=5 // pred_check_branch
        %209 = sbr.rel (%p206) target = $region40
      $region39: #{tpu_custom_call.1} parent=5 // pred_region
        %s210 = ssub.s32 %s14, 1
        %s211 = sand.u32 %s27, 1
        %s212 = scalar_lea.sflag [#allocation3], %s211
        %s213 = sand.u32 %s27, 1
        %s214 = smul.addr %s213, 128
        %s215 = scalar_lea.vmem [#allocation2], %s214
        // Predicated region
        $region41: #{tpu_custom_call.1} parent=39 // pred_check
          %p216 = pneg %p40
        $region42: #{tpu_custom_call.1} parent=39 // pred_check_branch
          %218 = sbr.rel (%p216) target = $region44
        $region43: #{tpu_custom_call.1} parent=39 // pred_region
          %220 = dma.done %s212, 2048
        $region44: #{tpu_custom_call.1} parent=39 // pred_fallthru
          _
        %s221 = sand.u32 %s27, 1
        %s222 = scalar_lea.sflag [#allocation3], %s221
        %s223 = sand.u32 %s27, 1
        %s224 = smul.addr %s223, 128
        %s225 = scalar_lea.vmem [#allocation2], %s224
        %p226 = pneg %p40
        %p227 = pneg %p37
        %p228 = pneg %p61
        %p229 = pneg %p58
        %p230 = pneg %p82
        %p231 = pneg %p79
        %p232 = pneg %p103
        %p233 = pneg %p100
        %p234 = pneg %p124
        %p235 = pneg %p121
        %p236 = pneg %p150
        %p237 = pneg %p147
        %p238 = scmp.lt.s32.totalorder %s19, 1
        %s239 = scalar_select %p238, %s19, 1
        %s240 = smul.addr %s239, 8
        %s241 = scalar_lea.vmem %s5, %s240
        %s242 = smul.u32 8, %s19
        %p243 = scmp.lt.s32.totalorder %s19, 1
        %s244 = scalar_select %p243, %s19, 1
        %s245 = smul.addr %s244, 8
        %s246 = scalar_lea.vmem %s5, %s245
        %v247 = vld [vmem:[%s215] sm:$0xff]
        %v248 = vld [vmem:[%s215 + $0x8] sm:$0xff]
        %v249 = vld [vmem:[%s215 + $0x10] sm:$0xff]
        %v250 = vld [vmem:[%s215 + $0x18] sm:$0xff]
        %v251 = vld [vmem:[%s215 + $0x20] sm:$0xff]
        %v252 = vld [vmem:[%s215 + $0x28] sm:$0xff]
        %v253 = vld [vmem:[%s215 + $0x30] sm:$0xff]
        %v254 = vld [vmem:[%s215 + $0x38] sm:$0xff]
        %v255 = vld [vmem:[%s215 + $0x40] sm:$0xff]
        %v256 = vld [vmem:[%s215 + $0x48] sm:$0xff]
        %v257 = vld [vmem:[%s215 + $0x50] sm:$0xff]
        %v258 = vld [vmem:[%s215 + $0x58] sm:$0xff]
        %v259 = vld [vmem:[%s215 + $0x60] sm:$0xff]
        %v260 = vld [vmem:[%s215 + $0x68] sm:$0xff]
        %v261 = vld [vmem:[%s215 + $0x70] sm:$0xff]
        %v262 = vld [vmem:[%s215 + $0x78] sm:$0xff]
        %v263 = vld [vmem:[%s1] sm:$0xff]
        %v264 = vld [vmem:[%s1 + $0x8] sm:$0xff]
        %vm265 = vcmask 130048
        %v267 = vsel %vm265, %v247, 0
        %v270 = vsel %vm265, %v248, 0
        %v273 = vsel %vm265, %v249, 0
        %v276 = vsel %vm265, %v250, 0
        %v279 = vsel %vm265, %v251, 0
        %v282 = vsel %vm265, %v252, 0
        %v285 = vsel %vm265, %v253, 0
        %v288 = vsel %vm265, %v254, 0
        %v291 = vsel %vm265, %v255, 0
        %v294 = vsel %vm265, %v256, 0
        %v297 = vsel %vm265, %v257, 0
        %v300 = vsel %vm265, %v258, 0
        %v303 = vsel %vm265, %v259, 0
        %v306 = vsel %vm265, %v260, 0
        %v309 = vsel %vm265, %v261, 0
        %v312 = vsel %vm265, %v262, 0
        %314 = vmatpush.msra.mxu0 0.0
        %315 = vmatpush.msra.mxu0 0.0
        %316 = vmatpush.msra.mxu0 0.0
        %317 = vmatpush.msra.mxu0 0.0
        %318 = vmatpush.msra.mxu0 0.0
        %319 = vmatpush.msra.mxu0 0.0
        %320 = vmatpush.msra.mxu0 0.0
        %321 = vmatpush.msra.mxu0 0.0
        %322 = vmatpush.msra.mxu0 0.0
        %323 = vmatpush.msra.mxu0 0.0
        %324 = vmatpush.msra.mxu0 0.0
        %325 = vmatpush.msra.mxu0 0.0
        %326 = vmatpush.msra.mxu0 0.0
        %327 = vmatpush.msra.mxu0 0.0
        %328 = vmatpush.msra.mxu0 %v264
        %329 = vmatpush.msra.mxu0 %v263
        %330 = vmatmul.f32.gmra.mxu0 %v267
        %v331 = vpop.f32.mrf.mxu0
        %v332 = vadd.f32 0.0, %v331
        %333 = vmatmul.f32.gmra.mxu0 %v270
        %v334 = vpop.f32.mrf.mxu0
        %v335 = vadd.f32 0.0, %v334
        %336 = vmatmul.f32.gmra.mxu0 %v273
        %v337 = vpop.f32.mrf.mxu0
        %v338 = vadd.f32 0.0, %v337
        %339 = vmatmul.f32.gmra.mxu0 %v276
        %v340 = vpop.f32.mrf.mxu0
        %v341 = vadd.f32 0.0, %v340
        %342 = vmatmul.f32.gmra.mxu0 %v279
        %v343 = vpop.f32.mrf.mxu0
        %v344 = vadd.f32 0.0, %v343
        %345 = vmatmul.f32.gmra.mxu0 %v282
        %v346 = vpop.f32.mrf.mxu0
        %v347 = vadd.f32 0.0, %v346
        %348 = vmatmul.f32.gmra.mxu0 %v285
        %v349 = vpop.f32.mrf.mxu0
        %v350 = vadd.f32 0.0, %v349
        %351 = vmatmul.f32.gmra.mxu0 %v288
        %v352 = vpop.f32.mrf.mxu0
        %v353 = vadd.f32 0.0, %v352
        %354 = vmatmul.f32.gmra.mxu0 %v291
        %v355 = vpop.f32.mrf.mxu0
        %v356 = vadd.f32 0.0, %v355
        %357 = vmatmul.f32.gmra.mxu0 %v294
        %v358 = vpop.f32.mrf.mxu0
        %v359 = vadd.f32 0.0, %v358
        %360 = vmatmul.f32.gmra.mxu0 %v297
        %v361 = vpop.f32.mrf.mxu0
        %v362 = vadd.f32 0.0, %v361
        %363 = vmatmul.f32.gmra.mxu0 %v300
        %v364 = vpop.f32.mrf.mxu0
        %v365 = vadd.f32 0.0, %v364
        %366 = vmatmul.f32.gmra.mxu0 %v303
        %v367 = vpop.f32.mrf.mxu0
        %v368 = vadd.f32 0.0, %v367
        %369 = vmatmul.f32.gmra.mxu0 %v306
        %v370 = vpop.f32.mrf.mxu0
        %v371 = vadd.f32 0.0, %v370
        %372 = vmatmul.f32.gmra.mxu0 %v309
        %v373 = vpop.f32.mrf.mxu0
        %v374 = vadd.f32 0.0, %v373
        %375 = vmatmul.f32.gmra.mxu0 %v312
        %v376 = vpop.f32.mrf.mxu0
        %v377 = vadd.f32 0.0, %v376
        %378 = vdwg.mxu0
        %vm395 = vcmask 1046528
        %v396 = vrot.slane %v332, 1
        %v397 = vrot.slane %v335, 1
        %v398 = vsel %vm395, %v396, %v397
        %v399 = vrot.slane %v338, 1
        %v400 = vrot.slane %v341, 1
        %v401 = vsel %vm395, %v399, %v400
        %v402 = vrot.slane %v344, 1
        %v403 = vrot.slane %v347, 1
        %v404 = vsel %vm395, %v402, %v403
        %v405 = vrot.slane %v350, 1
        %v406 = vrot.slane %v353, 1
        %v407 = vsel %vm395, %v405, %v406
        %v408 = vrot.slane %v356, 1
        %v409 = vrot.slane %v359, 1
        %v410 = vsel %vm395, %v408, %v409
        %v411 = vrot.slane %v362, 1
        %v412 = vrot.slane %v365, 1
        %v413 = vsel %vm395, %v411, %v412
        %v414 = vrot.slane %v368, 1
        %v415 = vrot.slane %v371, 1
        %v416 = vsel %vm395, %v414, %v415
        %v417 = vrot.slane %v374, 1
        %v418 = vrot.slane %v377, 1
        %v419 = vsel %vm395, %v417, %v418
        %420 = vrot.lane.b32.xlu0 %v398, 120
        %v421 = vpop.permute.xlu0 %420
        %422 = vrot.lane.b32.xlu0 %v397, 120
        %v423 = vpop.permute.xlu0 %422
        %424 = vrot.lane.b32.xlu0 %v401, 120
        %v425 = vpop.permute.xlu0 %424
        %426 = vrot.lane.b32.xlu0 %v400, 120
        %v427 = vpop.permute.xlu0 %426
        %428 = vrot.lane.b32.xlu0 %v404, 120
        %v429 = vpop.permute.xlu0 %428
        %430 = vrot.lane.b32.xlu0 %v403, 120
        %v431 = vpop.permute.xlu0 %430
        %432 = vrot.lane.b32.xlu0 %v407, 120
        %v433 = vpop.permute.xlu0 %432
        %434 = vrot.lane.b32.xlu0 %v406, 120
        %v435 = vpop.permute.xlu0 %434
        %436 = vrot.lane.b32.xlu0 %v410, 120
        %v437 = vpop.permute.xlu0 %436
        %438 = vrot.lane.b32.xlu0 %v409, 120
        %v439 = vpop.permute.xlu0 %438
        %440 = vrot.lane.b32.xlu0 %v413, 120
        %v441 = vpop.permute.xlu0 %440
        %442 = vrot.lane.b32.xlu0 %v412, 120
        %v443 = vpop.permute.xlu0 %442
        %444 = vrot.lane.b32.xlu0 %v416, 120
        %v445 = vpop.permute.xlu0 %444
        %446 = vrot.lane.b32.xlu0 %v415, 120
        %v447 = vpop.permute.xlu0 %446
        %448 = vrot.lane.b32.xlu0 %v419, 120
        %v449 = vpop.permute.xlu0 %448
        %450 = vrot.lane.b32.xlu0 %v418, 120
        %v451 = vpop.permute.xlu0 %450
        %v468 = vadd.f32 %v332, %v421
        %v469 = vadd.f32 %v335, %v423
        %v470 = vadd.f32 %v338, %v425
        %v471 = vadd.f32 %v341, %v427
        %v472 = vadd.f32 %v344, %v429
        %v473 = vadd.f32 %v347, %v431
        %v474 = vadd.f32 %v350, %v433
        %v475 = vadd.f32 %v353, %v435
        %v476 = vadd.f32 %v356, %v437
        %v477 = vadd.f32 %v359, %v439
        %v478 = vadd.f32 %v362, %v441
        %v479 = vadd.f32 %v365, %v443
        %v480 = vadd.f32 %v368, %v445
        %v481 = vadd.f32 %v371, %v447
        %v482 = vadd.f32 %v374, %v449
        %v483 = vadd.f32 %v377, %v451
        %vm484 = vcmask 1045504
        %v485 = vrot.slane %v332, 2
        %v486 = vrot.slane %v335, 2
        %v487 = vsel %vm484, %v485, %v486
        %v488 = vrot.slane %v338, 2
        %v489 = vrot.slane %v341, 2
        %v490 = vsel %vm484, %v488, %v489
        %v491 = vrot.slane %v344, 2
        %v492 = vrot.slane %v347, 2
        %v493 = vsel %vm484, %v491, %v492
        %v494 = vrot.slane %v350, 2
        %v495 = vrot.slane %v353, 2
        %v496 = vsel %vm484, %v494, %v495
        %v497 = vrot.slane %v356, 2
        %v498 = vrot.slane %v359, 2
        %v499 = vsel %vm484, %v497, %v498
        %v500 = vrot.slane %v362, 2
        %v501 = vrot.slane %v365, 2
        %v502 = vsel %vm484, %v500, %v501
        %v503 = vrot.slane %v368, 2
        %v504 = vrot.slane %v371, 2
        %v505 = vsel %vm484, %v503, %v504
        %v506 = vrot.slane %v374, 2
        %v507 = vrot.slane %v377, 2
        %v508 = vsel %vm484, %v506, %v507
        %509 = vrot.lane.b32.xlu0 %v487, 112
        %v510 = vpop.permute.xlu0 %509
        %511 = vrot.lane.b32.xlu0 %v486, 112
        %v512 = vpop.permute.xlu0 %511
        %513 = vrot.lane.b32.xlu0 %v490, 112
        %v514 = vpop.permute.xlu0 %513
        %515 = vrot.lane.b32.xlu0 %v489, 112
        %v516 = vpop.permute.xlu0 %515
        %517 = vrot.lane.b32.xlu0 %v493, 112
        %v518 = vpop.permute.xlu0 %517
        %519 = vrot.lane.b32.xlu0 %v492, 112
        %v520 = vpop.permute.xlu0 %519
        %521 = vrot.lane.b32.xlu0 %v496, 112
        %v522 = vpop.permute.xlu0 %521
        %523 = vrot.lane.b32.xlu0 %v495, 112
        %v524 = vpop.permute.xlu0 %523
        %525 = vrot.lane.b32.xlu0 %v499, 112
        %v526 = vpop.permute.xlu0 %525
        %527 = vrot.lane.b32.xlu0 %v498, 112
        %v528 = vpop.permute.xlu0 %527
        %529 = vrot.lane.b32.xlu0 %v502, 112
        %v530 = vpop.permute.xlu0 %529
        %531 = vrot.lane.b32.xlu0 %v501, 112
        %v532 = vpop.permute.xlu0 %531
        %533 = vrot.lane.b32.xlu0 %v505, 112
        %v534 = vpop.permute.xlu0 %533
        %535 = vrot.lane.b32.xlu0 %v504, 112
        %v536 = vpop.permute.xlu0 %535
        %537 = vrot.lane.b32.xlu0 %v508, 112
        %v538 = vpop.permute.xlu0 %537
        %539 = vrot.lane.b32.xlu0 %v507, 112
        %v540 = vpop.permute.xlu0 %539
        %v557 = vadd.f32 %v468, %v510
        %v558 = vadd.f32 %v469, %v512
        %v559 = vadd.f32 %v470, %v514
        %v560 = vadd.f32 %v471, %v516
        %v561 = vadd.f32 %v472, %v518
        %v562 = vadd.f32 %v473, %v520
        %v563 = vadd.f32 %v474, %v522
        %v564 = vadd.f32 %v475, %v524
        %v565 = vadd.f32 %v476, %v526
        %v566 = vadd.f32 %v477, %v528
        %v567 = vadd.f32 %v478, %v530
        %v568 = vadd.f32 %v479, %v532
        %v569 = vadd.f32 %v480, %v534
        %v570 = vadd.f32 %v481, %v536
        %v571 = vadd.f32 %v482, %v538
        %v572 = vadd.f32 %v483, %v540
        %vm573 = vcmask 64512
        %v574 = vsel %vm573, %v557, -inf
        %vm575 = vcmask 62464
        %v576 = vsel %vm575, %v558, -inf
        %v577 = vmax.f32 %v574, %v576
        %v578 = vrot.slane %v577, 4
        %v579 = vmax.f32 %v577, %v578
        %v580 = vrot.slane %v579, 2
        %v581 = vmax.f32 %v579, %v580
        %v582 = vrot.slane %v581, 1
        %v583 = vmax.f32 %v581, %v582
        %v584 = vsel %vm573, %v559, -inf
        %v585 = vsel %vm575, %v560, -inf
        %v586 = vmax.f32 %v584, %v585
        %v587 = vrot.slane %v586, 4
        %v588 = vmax.f32 %v586, %v587
        %v589 = vrot.slane %v588, 2
        %v590 = vmax.f32 %v588, %v589
        %v591 = vrot.slane %v590, 1
        %v592 = vmax.f32 %v590, %v591
        %v593 = vsel %vm573, %v561, -inf
        %v594 = vsel %vm575, %v562, -inf
        %v595 = vmax.f32 %v593, %v594
        %v596 = vrot.slane %v595, 4
        %v597 = vmax.f32 %v595, %v596
        %v598 = vrot.slane %v597, 2
        %v599 = vmax.f32 %v597, %v598
        %v600 = vrot.slane %v599, 1
        %v601 = vmax.f32 %v599, %v600
        %v602 = vsel %vm573, %v563, -inf
        %v603 = vsel %vm575, %v564, -inf
        %v604 = vmax.f32 %v602, %v603
        %v605 = vrot.slane %v604, 4
        %v606 = vmax.f32 %v604, %v605
        %v607 = vrot.slane %v606, 2
        %v608 = vmax.f32 %v606, %v607
        %v609 = vrot.slane %v608, 1
        %v610 = vmax.f32 %v608, %v609
        %v611 = vsel %vm573, %v565, -inf
        %v612 = vsel %vm575, %v566, -inf
        %v613 = vmax.f32 %v611, %v612
        %v614 = vrot.slane %v613, 4
        %v615 = vmax.f32 %v613, %v614
        %v616 = vrot.slane %v615, 2
        %v617 = vmax.f32 %v615, %v616
        %v618 = vrot.slane %v617, 1
        %v619 = vmax.f32 %v617, %v618
        %v620 = vsel %vm573, %v567, -inf
        %v621 = vsel %vm575, %v568, -inf
        %v622 = vmax.f32 %v620, %v621
        %v623 = vrot.slane %v622, 4
        %v624 = vmax.f32 %v622, %v623
        %v625 = vrot.slane %v624, 2
        %v626 = vmax.f32 %v624, %v625
        %v627 = vrot.slane %v626, 1
        %v628 = vmax.f32 %v626, %v627
        %v629 = vsel %vm573, %v569, -inf
        %v630 = vsel %vm575, %v570, -inf
        %v631 = vmax.f32 %v629, %v630
        %v632 = vrot.slane %v631, 4
        %v633 = vmax.f32 %v631, %v632
        %v634 = vrot.slane %v633, 2
        %v635 = vmax.f32 %v633, %v634
        %v636 = vrot.slane %v635, 1
        %v637 = vmax.f32 %v635, %v636
        %v638 = vsel %vm573, %v571, -inf
        %v639 = vsel %vm575, %v572, -inf
        %v640 = vmax.f32 %v638, %v639
        %v641 = vrot.slane %v640, 4
        %v642 = vmax.f32 %v640, %v641
        %v643 = vrot.slane %v642, 2
        %v644 = vmax.f32 %v642, %v643
        %v645 = vrot.slane %v644, 1
        %v646 = vmax.f32 %v644, %v645
        %vm647 = vcmask 1044480
        %v648 = vrot.slane %v332, 3
        %v649 = vrot.slane %v335, 3
        %v650 = vsel %vm647, %v648, %v649
        %v651 = vrot.slane %v338, 3
        %v652 = vrot.slane %v341, 3
        %v653 = vsel %vm647, %v651, %v652
        %v654 = vrot.slane %v344, 3
        %v655 = vrot.slane %v347, 3
        %v656 = vsel %vm647, %v654, %v655
        %v657 = vrot.slane %v350, 3
        %v658 = vrot.slane %v353, 3
        %v659 = vsel %vm647, %v657, %v658
        %v660 = vrot.slane %v356, 3
        %v661 = vrot.slane %v359, 3
        %v662 = vsel %vm647, %v660, %v661
        %v663 = vrot.slane %v362, 3
        %v664 = vrot.slane %v365, 3
        %v665 = vsel %vm647, %v663, %v664
        %v666 = vrot.slane %v368, 3
        %v667 = vrot.slane %v371, 3
        %v668 = vsel %vm647, %v666, %v667
        %v669 = vrot.slane %v374, 3
        %v670 = vrot.slane %v377, 3
        %v671 = vsel %vm647, %v669, %v670
        %672 = vrot.lane.b32.xlu0 %v650, 104
        %v673 = vpop.permute.xlu0 %672
        %674 = vrot.lane.b32.xlu0 %v649, 104
        %v675 = vpop.permute.xlu0 %674
        %676 = vrot.lane.b32.xlu0 %v653, 104
        %v677 = vpop.permute.xlu0 %676
        %678 = vrot.lane.b32.xlu0 %v652, 104
        %v679 = vpop.permute.xlu0 %678
        %680 = vrot.lane.b32.xlu0 %v656, 104
        %v681 = vpop.permute.xlu0 %680
        %682 = vrot.lane.b32.xlu0 %v655, 104
        %v683 = vpop.permute.xlu0 %682
        %684 = vrot.lane.b32.xlu0 %v659, 104
        %v685 = vpop.permute.xlu0 %684
        %686 = vrot.lane.b32.xlu0 %v658, 104
        %v687 = vpop.permute.xlu0 %686
        %688 = vrot.lane.b32.xlu0 %v662, 104
        %v689 = vpop.permute.xlu0 %688
        %690 = vrot.lane.b32.xlu0 %v661, 104
        %v691 = vpop.permute.xlu0 %690
        %692 = vrot.lane.b32.xlu0 %v665, 104
        %v693 = vpop.permute.xlu0 %692
        %694 = vrot.lane.b32.xlu0 %v664, 104
        %v695 = vpop.permute.xlu0 %694
        %696 = vrot.lane.b32.xlu0 %v668, 104
        %v697 = vpop.permute.xlu0 %696
        %698 = vrot.lane.b32.xlu0 %v667, 104
        %v699 = vpop.permute.xlu0 %698
        %700 = vrot.lane.b32.xlu0 %v671, 104
        %v701 = vpop.permute.xlu0 %700
        %702 = vrot.lane.b32.xlu0 %v670, 104
        %v703 = vpop.permute.xlu0 %702
        %v720 = vadd.f32 %v557, %v673
        %v721 = vadd.f32 %v558, %v675
        %v722 = vadd.f32 %v559, %v677
        %v723 = vadd.f32 %v560, %v679
        %v724 = vadd.f32 %v561, %v681
        %v725 = vadd.f32 %v562, %v683
        %v726 = vadd.f32 %v563, %v685
        %v727 = vadd.f32 %v564, %v687
        %v728 = vadd.f32 %v565, %v689
        %v729 = vadd.f32 %v566, %v691
        %v730 = vadd.f32 %v567, %v693
        %v731 = vadd.f32 %v568, %v695
        %v732 = vadd.f32 %v569, %v697
        %v733 = vadd.f32 %v570, %v699
        %v734 = vadd.f32 %v571, %v701
        %v735 = vadd.f32 %v572, %v703
        %vm736 = vcmask 261312
        %v737 = vsel %vm736, %v720, -inf
        %vm738 = vcmask 258240
        %v739 = vsel %vm738, %v721, -inf
        %v740 = vmax.f32 %v737, %v739
        %v741 = vrot.slane %v740, 4
        %v742 = vmax.f32 %v740, %v741
        %v743 = vrot.slane %v742, 2
        %v744 = vmax.f32 %v742, %v743
        %v745 = vrot.slane %v744, 1
        %v746 = vmax.f32 %v744, %v745
        %v747 = vsel %vm736, %v722, -inf
        %v748 = vsel %vm738, %v723, -inf
        %v749 = vmax.f32 %v747, %v748
        %v750 = vrot.slane %v749, 4
        %v751 = vmax.f32 %v749, %v750
        %v752 = vrot.slane %v751, 2
        %v753 = vmax.f32 %v751, %v752
        %v754 = vrot.slane %v753, 1
        %v755 = vmax.f32 %v753, %v754
        %v756 = vsel %vm736, %v724, -inf
        %v757 = vsel %vm738, %v725, -inf
        %v758 = vmax.f32 %v756, %v757
        %v759 = vrot.slane %v758, 4
        %v760 = vmax.f32 %v758, %v759
        %v761 = vrot.slane %v760, 2
        %v762 = vmax.f32 %v760, %v761
        %v763 = vrot.slane %v762, 1
        %v764 = vmax.f32 %v762, %v763
        %v765 = vsel %vm736, %v726, -inf
        %v766 = vsel %vm738, %v727, -inf
        %v767 = vmax.f32 %v765, %v766
        %v768 = vrot.slane %v767, 4
        %v769 = vmax.f32 %v767, %v768
        %v770 = vrot.slane %v769, 2
        %v771 = vmax.f32 %v769, %v770
        %v772 = vrot.slane %v771, 1
        %v773 = vmax.f32 %v771, %v772
        %v774 = vsel %vm736, %v728, -inf
        %v775 = vsel %vm738, %v729, -inf
        %v776 = vmax.f32 %v774, %v775
        %v777 = vrot.slane %v776, 4
        %v778 = vmax.f32 %v776, %v777
        %v779 = vrot.slane %v778, 2
        %v780 = vmax.f32 %v778, %v779
        %v781 = vrot.slane %v780, 1
        %v782 = vmax.f32 %v780, %v781
        %v783 = vsel %vm736, %v730, -inf
        %v784 = vsel %vm738, %v731, -inf
        %v785 = vmax.f32 %v783, %v784
        %v786 = vrot.slane %v785, 4
        %v787 = vmax.f32 %v785, %v786
        %v788 = vrot.slane %v787, 2
        %v789 = vmax.f32 %v787, %v788
        %v790 = vrot.slane %v789, 1
        %v791 = vmax.f32 %v789, %v790
        %v792 = vsel %vm736, %v732, -inf
        %v793 = vsel %vm738, %v733, -inf
        %v794 = vmax.f32 %v792, %v793
        %v795 = vrot.slane %v794, 4
        %v796 = vmax.f32 %v794, %v795
        %v797 = vrot.slane %v796, 2
        %v798 = vmax.f32 %v796, %v797
        %v799 = vrot.slane %v798, 1
        %v800 = vmax.f32 %v798, %v799
        %v801 = vsel %vm736, %v734, -inf
        %v802 = vsel %vm738, %v735, -inf
        %v803 = vmax.f32 %v801, %v802
        %v804 = vrot.slane %v803, 4
        %v805 = vmax.f32 %v803, %v804
        %v806 = vrot.slane %v805, 2
        %v807 = vmax.f32 %v805, %v806
        %v808 = vrot.slane %v807, 1
        %v809 = vmax.f32 %v807, %v808
        %vm810 = vcmask 1043456
        %v811 = vrot.slane %v332, 4
        %v812 = vrot.slane %v335, 4
        %v813 = vsel %vm810, %v811, %v812
        %v814 = vrot.slane %v338, 4
        %v815 = vrot.slane %v341, 4
        %v816 = vsel %vm810, %v814, %v815
        %v817 = vrot.slane %v344, 4
        %v818 = vrot.slane %v347, 4
        %v819 = vsel %vm810, %v817, %v818
        %v820 = vrot.slane %v350, 4
        %v821 = vrot.slane %v353, 4
        %v822 = vsel %vm810, %v820, %v821
        %v823 = vrot.slane %v356, 4
        %v824 = vrot.slane %v359, 4
        %v825 = vsel %vm810, %v823, %v824
        %v826 = vrot.slane %v362, 4
        %v827 = vrot.slane %v365, 4
        %v828 = vsel %vm810, %v826, %v827
        %v829 = vrot.slane %v368, 4
        %v830 = vrot.slane %v371, 4
        %v831 = vsel %vm810, %v829, %v830
        %v832 = vrot.slane %v374, 4
        %v833 = vrot.slane %v377, 4
        %v834 = vsel %vm810, %v832, %v833
        %835 = vrot.lane.b32.xlu0 %v813, 96
        %v836 = vpop.permute.xlu0 %835
        %837 = vrot.lane.b32.xlu0 %v812, 96
        %v838 = vpop.permute.xlu0 %837
        %839 = vrot.lane.b32.xlu0 %v816, 96
        %v840 = vpop.permute.xlu0 %839
        %841 = vrot.lane.b32.xlu0 %v815, 96
        %v842 = vpop.permute.xlu0 %841
        %843 = vrot.lane.b32.xlu0 %v819, 96
        %v844 = vpop.permute.xlu0 %843
        %845 = vrot.lane.b32.xlu0 %v818, 96
        %v846 = vpop.permute.xlu0 %845
        %847 = vrot.lane.b32.xlu0 %v822, 96
        %v848 = vpop.permute.xlu0 %847
        %849 = vrot.lane.b32.xlu0 %v821, 96
        %v850 = vpop.permute.xlu0 %849
        %851 = vrot.lane.b32.xlu0 %v825, 96
        %v852 = vpop.permute.xlu0 %851
        %853 = vrot.lane.b32.xlu0 %v824, 96
        %v854 = vpop.permute.xlu0 %853
        %855 = vrot.lane.b32.xlu0 %v828, 96
        %v856 = vpop.permute.xlu0 %855
        %857 = vrot.lane.b32.xlu0 %v827, 96
        %v858 = vpop.permute.xlu0 %857
        %859 = vrot.lane.b32.xlu0 %v831, 96
        %v860 = vpop.permute.xlu0 %859
        %861 = vrot.lane.b32.xlu0 %v830, 96
        %v862 = vpop.permute.xlu0 %861
        %863 = vrot.lane.b32.xlu0 %v834, 96
        %v864 = vpop.permute.xlu0 %863
        %865 = vrot.lane.b32.xlu0 %v833, 96
        %v866 = vpop.permute.xlu0 %865
        %v883 = vadd.f32 %v720, %v836
        %v884 = vadd.f32 %v721, %v838
        %v885 = vadd.f32 %v722, %v840
        %v886 = vadd.f32 %v723, %v842
        %v887 = vadd.f32 %v724, %v844
        %v888 = vadd.f32 %v725, %v846
        %v889 = vadd.f32 %v726, %v848
        %v890 = vadd.f32 %v727, %v850
        %v891 = vadd.f32 %v728, %v852
        %v892 = vadd.f32 %v729, %v854
        %v893 = vadd.f32 %v730, %v856
        %v894 = vadd.f32 %v731, %v858
        %v895 = vadd.f32 %v732, %v860
        %v896 = vadd.f32 %v733, %v862
        %v897 = vadd.f32 %v734, %v864
        %v898 = vadd.f32 %v735, %v866
        %vm899 = vcmask 523712
        %v900 = vsel %vm899, %v883, -inf
        %vm901 = vcmask 519616
        %v902 = vsel %vm901, %v884, -inf
        %v903 = vmax.f32 %v900, %v902
        %v904 = vrot.slane %v903, 4
        %v905 = vmax.f32 %v903, %v904
        %v906 = vrot.slane %v905, 2
        %v907 = vmax.f32 %v905, %v906
        %v908 = vrot.slane %v907, 1
        %v909 = vmax.f32 %v907, %v908
        %v910 = vsel %vm899, %v885, -inf
        %v911 = vsel %vm901, %v886, -inf
        %v912 = vmax.f32 %v910, %v911
        %v913 = vrot.slane %v912, 4
        %v914 = vmax.f32 %v912, %v913
        %v915 = vrot.slane %v914, 2
        %v916 = vmax.f32 %v914, %v915
        %v917 = vrot.slane %v916, 1
        %v918 = vmax.f32 %v916, %v917
        %v919 = vsel %vm899, %v887, -inf
        %v920 = vsel %vm901, %v888, -inf
        %v921 = vmax.f32 %v919, %v920
        %v922 = vrot.slane %v921, 4
        %v923 = vmax.f32 %v921, %v922
        %v924 = vrot.slane %v923, 2
        %v925 = vmax.f32 %v923, %v924
        %v926 = vrot.slane %v925, 1
        %v927 = vmax.f32 %v925, %v926
        %v928 = vsel %vm899, %v889, -inf
        %v929 = vsel %vm901, %v890, -inf
        %v930 = vmax.f32 %v928, %v929
        %v931 = vrot.slane %v930, 4
        %v932 = vmax.f32 %v930, %v931
        %v933 = vrot.slane %v932, 2
        %v934 = vmax.f32 %v932, %v933
        %v935 = vrot.slane %v934, 1
        %v936 = vmax.f32 %v934, %v935
        %v937 = vsel %vm899, %v891, -inf
        %v938 = vsel %vm901, %v892, -inf
        %v939 = vmax.f32 %v937, %v938
        %v940 = vrot.slane %v939, 4
        %v941 = vmax.f32 %v939, %v940
        %v942 = vrot.slane %v941, 2
        %v943 = vmax.f32 %v941, %v942
        %v944 = vrot.slane %v943, 1
        %v945 = vmax.f32 %v943, %v944
        %v946 = vsel %vm899, %v893, -inf
        %v947 = vsel %vm901, %v894, -inf
        %v948 = vmax.f32 %v946, %v947
        %v949 = vrot.slane %v948, 4
        %v950 = vmax.f32 %v948, %v949
        %v951 = vrot.slane %v950, 2
        %v952 = vmax.f32 %v950, %v951
        %v953 = vrot.slane %v952, 1
        %v954 = vmax.f32 %v952, %v953
        %v955 = vsel %vm899, %v895, -inf
        %v956 = vsel %vm901, %v896, -inf
        %v957 = vmax.f32 %v955, %v956
        %v958 = vrot.slane %v957, 4
        %v959 = vmax.f32 %v957, %v958
        %v960 = vrot.slane %v959, 2
        %v961 = vmax.f32 %v959, %v960
        %v962 = vrot.slane %v961, 1
        %v963 = vmax.f32 %v961, %v962
        %v964 = vsel %vm899, %v897, -inf
        %v965 = vsel %vm901, %v898, -inf
        %v966 = vmax.f32 %v964, %v965
        %v967 = vrot.slane %v966, 4
        %v968 = vmax.f32 %v966, %v967
        %v969 = vrot.slane %v968, 2
        %v970 = vmax.f32 %v968, %v969
        %v971 = vrot.slane %v970, 1
        %v972 = vmax.f32 %v970, %v971
        %vm981 = vcmask 1041409
        %v982 = vsel %vm981, %v592, %v583
        %vm983 = vcmask 1042434
        %v984 = vsel %vm983, %v601, %v982
        %vm985 = vcmask 1043459
        %v986 = vsel %vm985, %v610, %v984
        %vm987 = vcmask 1044484
        %v988 = vsel %vm987, %v619, %v986
        %vm989 = vcmask 1045509
        %v990 = vsel %vm989, %v628, %v988
        %vm991 = vcmask 1046534
        %v992 = vsel %vm991, %v637, %v990
        %vm993 = vcmask 1047559
        %v994 = vsel %vm993, %v646, %v992
        %v1004 = vsel %vm981, %v755, %v746
        %v1005 = vsel %vm983, %v764, %v1004
        %v1006 = vsel %vm985, %v773, %v1005
        %v1007 = vsel %vm987, %v782, %v1006
        %v1008 = vsel %vm989, %v791, %v1007
        %v1009 = vsel %vm991, %v800, %v1008
        %v1010 = vsel %vm993, %v809, %v1009
        %1011 = vrot.lane.b32.xlu0 %v1010, 112
        %v1012 = vpop.permute.xlu0 %1011
        %v1022 = vsel %vm981, %v918, %v909
        %v1023 = vsel %vm983, %v927, %v1022
        %v1024 = vsel %vm985, %v936, %v1023
        %v1025 = vsel %vm987, %v945, %v1024
        %v1026 = vsel %vm989, %v954, %v1025
        %v1027 = vsel %vm991, %v963, %v1026
        %v1028 = vsel %vm993, %v972, %v1027
        %1029 = vrot.lane.b32.xlu0 %v1028, 88
        %v1030 = vpop.permute.xlu0 %1029
        %v1032 = vsel %vm573, %v994, %v1012
        %v1033 = vsel %vm265, %v1032, %v1030
        %v1034 = vld [vmem:[%s2] sm:$0x1]
        %v1036 = vperm.slane %v1034, 0
        %v1038 = vadd.f32 %v1033, %v1036
        %v1039 = vmax.f32 %v1038, 0.0
        %v1040 = vld [vmem:[%s3] sm:$0xff]
        %v1041 = vld [vmem:[%s3 + $0x8] sm:$0xff]
        %v1042 = vld [vmem:[%s3 + $0x10] sm:$0xff]
        %v1043 = vld [vmem:[%s4] sm:$0x1]
        %v1045 = vperm.slane %v1043, 0
        %vm1047 = vcmask 195584
        %v1049 = vsel %vm1047, %v1039, 0
        %1051 = vmatpush.msra.mxu0 0.0
        %1052 = vmatpush.msra.mxu0 0.0
        %1053 = vmatpush.msra.mxu0 0.0
        %1054 = vmatpush.msra.mxu0 0.0
        %1055 = vmatpush.msra.mxu0 0.0
        %1056 = vmatpush.msra.mxu0 0.0
        %1057 = vmatpush.msra.mxu0 0.0
        %1058 = vmatpush.msra.mxu0 0.0
        %1059 = vmatpush.msra.mxu0 0.0
        %1060 = vmatpush.msra.mxu0 0.0
        %1061 = vmatpush.msra.mxu0 0.0
        %1062 = vmatpush.msra.mxu0 0.0
        %1063 = vmatpush.msra.mxu0 0.0
        %1064 = vmatpush.msra.mxu0 %v1042
        %1065 = vmatpush.msra.mxu0 %v1041
        %1066 = vmatpush.msra.mxu0 %v1040
        %1067 = vmatmul.f32.gmra.mxu0 %v1049
        %v1068 = vpop.f32.mrf.mxu0
        %v1069 = vadd.f32 %v1045, %v1068
        %1070 = vdwg.mxu0
        %vm1071 = vcmask 23552
        %1072 = vst.msk [vmem:[%s246] sm:$0xff] %vm1071, %v1069
        %p1073 = scmp.lt.s32.totalorder %s19, 1
        %s1074 = scalar_select %p1073, %s19, 1
        %s1075 = smul.addr %s1074, 8
        %s1076 = scalar_lea.vmem %s5, %s1075
        // Predicated region
        $region45: #{tpu_custom_call.1} parent=39 // pred_check
          %p1077 = pneg %p147
        $region46: #{tpu_custom_call.1} parent=39 // pred_check_branch
          %1079 = sbr.rel (%p1077) target = $region48
        $region47: #{tpu_custom_call.1} parent=39 // pred_region
          _
        $region48: #{tpu_custom_call.1} parent=39 // pred_fallthru
          _
      $region40: #{tpu_custom_call.1} parent=5 // pred_fallthru
        _
      %p1080 = scmp.le.s32.totalorder 2, %s14
      // Predicated region
      $region49: #{tpu_custom_call.1} parent=5 // pred_check
        %p1081 = pneg %p1080
      $region50: #{tpu_custom_call.1} parent=5 // pred_check_branch
        %1083 = sbr.rel (%p1081) target = $region52
      $region51: #{tpu_custom_call.1} parent=5 // pred_region
        %s1084 = ssub.s32 %s14, 2
        // Predicated region
        $region53: #{tpu_custom_call.1} parent=51 // pred_check
          %p1085 = pneg %p153
        $region54: #{tpu_custom_call.1} parent=51 // pred_check_branch
          %1087 = sbr.rel (%p1085) target = $region56
        $region55: #{tpu_custom_call.1} parent=51 // pred_region
          %p1088 = scmp.lt.s32.totalorder %s20, 1
          %s1089 = scalar_select %p1088, %s20, 1
          %s1090 = smul.addr %s1089, 8
          %s1091 = scalar_lea.vmem %s5, %s1090
        $region56: #{tpu_custom_call.1} parent=51 // pred_fallthru
          _
      $region52: #{tpu_custom_call.1} parent=5 // pred_fallthru
        _
    $region6: #{tpu_custom_call.1} parent=1 // loop_footer
      %s18 = sadd.s32 1, %s14
    $region7: #{tpu_custom_call.1} parent=1 // loop_footer_branch
      %13 = sbr.rel target = $region3
    $region8: #{tpu_custom_call.1} parent=1 // loop_exit
      _
    %1092 = vsyncpa [#allocation3], 1
    %s1093 = scalar_lea.sflag [#allocation3], 1
    %1094 = vsyncpa %s1093, 1

</llo_original>
